<compile_context>
chip_gen: v6e
topology: v6e:2x2x1
jax: 0.10.0
libtpu: 0.0.40
codegen_flags: <defaults>
</compile_context>

<pallas_src>
import math
import functools

import jax
import jax.numpy as jnp
from jax import lax
from jax.experimental import pallas as pl
from jax.experimental.pallas import tpu as pltpu


def _round_up(x, m):
    return ((x + m - 1) // m) * m


def _pick_batch_block(batch):
    """Batch elements packed per grid step.

    Packs several batch elements per step (amortizes ~0.35us per-step pipeline
    overhead, grows the matmul M dim) while keeping >= 2 parallel grid steps
    whenever batch >= 2 so both v7x TensorCores stay busy.
    """
    target = max(1, min(8, batch // 2))
    for bb in range(target, 0, -1):
        if batch % bb == 0:
            return bb
    return 1


# ---------------------------------------------------------------------------
# Pallas kernel: one grid step == one block of BB batch elements.
# ---------------------------------------------------------------------------
def _mha_kernel(n_heads, d_k,
                q_ref, k_ref, v_ref, maskb_ref,
                wqkv_ref, bqkv_ref, wo_ref, bo_ref,
                o_ref):
    # q/k/v_ref : (BB, S, Dp) bf16 activations
    # maskb_ref : (H*S, S) f32 additive mask bias (0 keep / -1e4 masked),
    #             already tiled across heads in the wrapper
    # wqkv_ref  : (Dp, 3*Dp) bf16 = [Wq*scale | Wk | Wv]   (x @ W layout)
    # bqkv_ref  : (1, 3*Dp)  f32  = [bq*scale | bk | bv]
    # wo_ref    : (Dp, Dp)   bf16
    # bo_ref    : (1, Dp)    f32
    # o_ref     : (BB, S, Dp)
    BB, S, Dp = q_ref.shape
    M = BB * S

    # ---- fused Q/K/V projection: one wide MXU matmul -----------------------
    # Row-stack the three streams (f32 concat of vreg-aligned (S,Dp) blocks,
    # then a single cast back to bf16 for the MXU).
    x2 = jnp.concatenate(
        [q_ref[...].reshape(M, Dp).astype(jnp.float32),
         k_ref[...].reshape(M, Dp).astype(jnp.float32),
         v_ref[...].reshape(M, Dp).astype(jnp.float32)],
        axis=0).astype(jnp.bfloat16)                                # (3M, Dp)
    y = jnp.dot(x2, wqkv_ref[...],
                preferred_element_type=jnp.float32) + bqkv_ref[...]  # (3M, 3Dp)
    # Diagonal blocks of y (the off-diagonal cross terms are waste the MXU
    # produces for free; all slice offsets are (8,128)-tile aligned).
    q_p = y[0 * M:1 * M, 0 * Dp:1 * Dp]     # (M, Dp) f32, pre-scaled 1/sqrt(d_k)
    k_p = y[1 * M:2 * M, 1 * Dp:2 * Dp]     # (M, Dp) f32
    v_p = y[2 * M:3 * M, 2 * Dp:3 * Dp]     # (M, Dp) f32
    k_pb = k_p.astype(jnp.bfloat16)

    # Per-head lane masks over the full 128-lane vreg (no sub-vreg slicing):
    # head h owns lanes [h*d_k, (h+1)*d_k).  Zeroing the other lanes lets the
    # score matmul contract over all Dp lanes and the context matmuls write
    # directly into the "concat heads" lane layout.
    lane = lax.broadcasted_iota(jnp.int32, (1, Dp), 1)
    head_masks = [
        ((lane >= h * d_k) & (lane < (h + 1) * d_k)).astype(jnp.float32)
        for h in range(n_heads)]

    mask_bias = maskb_ref[...]                                      # (H*S, S)

    ctx_blocks = []
    # Static loop over the packed batch elements (BB is small).
    for b in range(BB):
        rows = slice(b * S, (b + 1) * S)
        q_b = q_p[rows]                                             # (S, Dp) f32
        k_b = k_pb[rows]                                            # (S, Dp) bf16
        v_b = v_p[rows]                                             # (S, Dp) f32

        # All heads' scores in ONE matmul: row-stack the head-masked queries.
        q_stack = jnp.concatenate(
            [q_b * head_masks[h] for h in range(n_heads)],
            axis=0).astype(jnp.bfloat16)                            # (H*S, Dp)
        scores = lax.dot_general(
            q_stack, k_b,
            dimension_numbers=(((1,), (1,)), ((), ())),
            preferred_element_type=jnp.float32)                     # (H*S, S)
        scores = scores + mask_bias

        # Numerically-stable softmax, batched over all heads at once (f32).
        scores = scores - jnp.max(scores, axis=-1, keepdims=True)
        e = jnp.exp(scores)
        p = e * pl.reciprocal(jnp.sum(e, axis=-1, keepdims=True), approx=True)

        # Per-head context, accumulated directly in the concat-heads layout
        # (head h only touches its own lanes because v is head-masked).
        ctx = jnp.zeros((S, Dp), jnp.float32)
        for h in range(n_heads):
            p_h = p[h * S:(h + 1) * S, :].astype(jnp.bfloat16)      # (S, S)
            v_h = (v_b * head_masks[h]).astype(jnp.bfloat16)        # (S, Dp)
            ctx = ctx + jnp.dot(p_h, v_h, preferred_element_type=jnp.float32)
        ctx_blocks.append(ctx)

    ctx_all = ctx_blocks[0] if BB == 1 else jnp.concatenate(ctx_blocks, axis=0)

    # Single output projection for the whole batch block.
    out = jnp.dot(ctx_all.astype(jnp.bfloat16), wo_ref[...],
                  preferred_element_type=jnp.float32) + bo_ref[...]  # (M, Dp)
    o_ref[...] = out.reshape(BB, S, Dp).astype(o_ref.dtype)


# ---------------------------------------------------------------------------
# One-time parameter preprocessing (hoisted out of the per-call path).
# ---------------------------------------------------------------------------
def prepare_mha_params(params, n_heads):
    D = params["wq"].shape[0]
    assert D % n_heads == 0
    d_k = D // n_heads
    Dp = _round_up(D, 128)
    scale = 1.0 / math.sqrt(d_k)

    def pad_mat(w):                    # (D, D) [in, out] -> (Dp, Dp)
        return jnp.pad(w, ((0, Dp - D), (0, Dp - D)))

    def pad_bias(b):                   # (D,) -> (1, Dp)
        return jnp.pad(b.reshape(1, D), ((0, 0), (0, Dp - D)))

    # PyTorch Linear stores [out, in]; transpose to [in, out] so y = x @ W.
    # Fold 1/sqrt(d_k) into the Q projection (weight AND bias).
    wq = pad_mat(params["wq"].T * scale)
    wk = pad_mat(params["wk"].T)
    wv = pad_mat(params["wv"].T)
    wqkv = jnp.concatenate([wq, wk, wv], axis=1).astype(jnp.bfloat16)   # (Dp,3Dp)
    bqkv = jnp.concatenate(
        [pad_bias(params["bq"] * scale), pad_bias(params["bk"]),
         pad_bias(params["bv"])], axis=1).astype(jnp.float32)           # (1,3Dp)

    wo = pad_mat(params["wo"].T).astype(jnp.bfloat16)                   # (Dp,Dp)
    bo = pad_bias(params["bo"]).astype(jnp.float32)                     # (1,Dp)

    return dict(wqkv=wqkv, bqkv=bqkv, wo=wo, bo=bo,
                d_model=D, d_pad=Dp, n_heads=n_heads, d_k=d_k)


# ---------------------------------------------------------------------------
# Forward wrapper.
# ---------------------------------------------------------------------------
def multi_head_attention(query, key, value, mask, prepped):
    """query/key/value: [B, S, D]; mask: [S, S] (1 = keep, 0 = masked)."""
    B, S, D = query.shape
    n_heads, d_k = prepped["n_heads"], prepped["d_k"]
    Dp = prepped["d_pad"]
    assert D == prepped["d_model"]

    bb = _pick_batch_block(B)
    nb = B // bb

    def pad_feat(x):
        x = x.astype(jnp.bfloat16)
        return x if Dp == D else jnp.pad(x, ((0, 0), (0, 0), (0, Dp - D)))

    q = pad_feat(query)
    k = pad_feat(key)
    v = pad_feat(value)

    # Additive mask bias (0 = keep, -1e4 = masked), pre-tiled across heads so
    # the kernel does a single add (no compare/select, no in-kernel tiling).
    mask_bias = jnp.where(mask == 0, jnp.float32(-10000.0), jnp.float32(0.0))
    mask_bias = jnp.tile(mask_bias, (n_heads, 1))                   # (H*S, S)

    act_spec = pl.BlockSpec((bb, S, Dp), lambda i: (i, 0, 0))
    out_spec = pl.BlockSpec((bb, S, Dp), lambda i: (i, 0, 0))
    maskb_spec = pl.BlockSpec((n_heads * S, S), lambda i: (0, 0))
    wqkv_spec = pl.BlockSpec((Dp, 3 * Dp), lambda i: (0, 0))
    bqkv_spec = pl.BlockSpec((1, 3 * Dp), lambda i: (0, 0))
    wo_spec = pl.BlockSpec((Dp, Dp), lambda i: (0, 0))
    bo_spec = pl.BlockSpec((1, Dp), lambda i: (0, 0))

    kernel = functools.partial(_mha_kernel, n_heads, d_k)

    out = pl.pallas_call(
        kernel,
        out_shape=jax.ShapeDtypeStruct((B, S, Dp), query.dtype),
        grid_spec=pltpu.PrefetchScalarGridSpec(
            num_scalar_prefetch=0,
            grid=(nb,),
            in_specs=[act_spec, act_spec, act_spec, maskb_spec,
                      wqkv_spec, bqkv_spec, wo_spec, bo_spec],
            out_specs=out_spec,
        ),
        compiler_params=pltpu.CompilerParams(
            dimension_semantics=("parallel",),
            vmem_limit_bytes=48 * 1024 * 1024),
    )(q, k, v, mask_bias, prepped["wqkv"], prepped["bqkv"],
      prepped["wo"], prepped["bo"])

    if Dp != D:
        out = out[:, :, :D]
    return out


# ---------------------------------------------------------------------------
# Pure-JAX f32 reference (mirrors the PyTorch forward) for correctness check.
# ---------------------------------------------------------------------------
def _reference(query, key, value, mask, params, n_heads):
    B, S, D = query.shape
    d_k = D // n_heads

    def lin(x, w, b):
        return jnp.einsum("bsd,od->bso", x, w) + b

    Q = lin(query, params["wq"], params["bq"]).reshape(B, S, n_heads, d_k).transpose(0, 2, 1, 3)
    K = lin(key, params["wk"], params["bk"]).reshape(B, S, n_heads, d_k).transpose(0, 2, 1, 3)
    V = lin(value, params["wv"], params["bv"]).reshape(B, S, n_heads, d_k).transpose(0, 2, 1, 3)

    scores = jnp.einsum("bhqd,bhkd->bhqk", Q, K) / math.sqrt(d_k)
    scores = jnp.where(mask[None, None, :, :] == 0, -10000.0, scores)
    attn = jax.nn.softmax(scores, axis=-1)
    out = jnp.einsum("bhqk,bhkd->bhqd", attn, V)
    out = out.transpose(0, 2, 1, 3).reshape(B, S, D)
    return jnp.einsum("bsd,od->bso", out, params["wo"]) + params["bo"]


if __name__ == "__main__":
    B, S, D, H = 2, 8, 32, 4

    key0 = jax.random.PRNGKey(0)
    keys = jax.random.split(key0, 12)

    scale = 1.0 / math.sqrt(D)
    params = {
        "wq": jax.random.uniform(keys[0], (D, D), jnp.float32, -scale, scale),
        "bq": jax.random.uniform(keys[1], (D,), jnp.float32, -scale, scale),
        "wk": jax.random.uniform(keys[2], (D, D), jnp.float32, -scale, scale),
        "bk": jax.random.uniform(keys[3], (D,), jnp.float32, -scale, scale),
        "wv": jax.random.uniform(keys[4], (D, D), jnp.float32, -scale, scale),
        "bv": jax.random.uniform(keys[5], (D,), jnp.float32, -scale, scale),
        "wo": jax.random.uniform(keys[6], (D, D), jnp.float32, -scale, scale),
        "bo": jax.random.uniform(keys[7], (D,), jnp.float32, -scale, scale),
    }

    query = jax.random.normal(keys[8], (B, S, D), jnp.float32)
    key_t = jax.random.normal(keys[9], (B, S, D), jnp.float32)
    value = jax.random.normal(keys[10], (B, S, D), jnp.float32)

    # Causal mask [S, S]: 1 = attend, 0 = masked (position-based pattern).
    mask = jnp.tril(jnp.ones((S, S), jnp.float32))

    # One-time parameter preprocessing (hoisted out of the forward path).
    prepped = prepare_mha_params(params, H)

    out = multi_head_attention(query, key_t, value, mask, prepped)
    out = jax.block_until_ready(out)

    ref = _reference(query, key_t, value, mask, params, H)
    assert out.shape == (B, S, D)
    # bf16 MXU inputs with f32 accumulation + approx reciprocal + additive
    # (-1e4) mask -> relaxed tolerance vs the f32 reference.
    assert jnp.allclose(out, ref, atol=5e-2, rtol=5e-2), "mismatch vs reference"

    print("KERNEL_OK")
</pallas_src>

<mosaic_0001>
module attributes {stable_mosaic.version = 11 : i64} {
  func.func @_mha_kernel(%arg0: i32, %arg1: memref<1x8x128xbf16, #tpu.memory_space<vmem>>, %arg2: memref<1x8x128xbf16, #tpu.memory_space<vmem>>, %arg3: memref<1x8x128xbf16, #tpu.memory_space<vmem>>, %arg4: memref<32x8xf32, #tpu.memory_space<vmem>>, %arg5: memref<128x384xbf16, #tpu.memory_space<vmem>>, %arg6: memref<1x384xf32, #tpu.memory_space<vmem>>, %arg7: memref<128x128xbf16, #tpu.memory_space<vmem>>, %arg8: memref<1x128xf32, #tpu.memory_space<vmem>>, %arg9: memref<1x8x128xf32, #tpu.memory_space<vmem>>) attributes {dimension_semantics = [#tpu.dimension_semantics<parallel>], iteration_bounds = array<i64: 2>, scalar_prefetch = 0 : i64, scratch_operands = 0 : i64, tpu.core_type = #tpu.core_type<tc>, window_params = [{transform_indices = @transform_0, window_bounds = array<i64: 1, 8, 128>}, {transform_indices = @transform_1, window_bounds = array<i64: 1, 8, 128>}, {transform_indices = @transform_2, window_bounds = array<i64: 1, 8, 128>}, {pipeline_mode = #tpu.pipeline_mode<synchronous>, transform_indices = @transform_3, window_bounds = array<i64: 32, 8>}, {pipeline_mode = #tpu.pipeline_mode<synchronous>, transform_indices = @transform_4, window_bounds = array<i64: 128, 384>}, {pipeline_mode = #tpu.pipeline_mode<synchronous>, transform_indices = @transform_5, window_bounds = array<i64: 1, 384>}, {pipeline_mode = #tpu.pipeline_mode<synchronous>, transform_indices = @transform_6, window_bounds = array<i64: 128, 128>}, {pipeline_mode = #tpu.pipeline_mode<synchronous>, transform_indices = @transform_7, window_bounds = array<i64: 1, 128>}, {transform_indices = @transform_8, window_bounds = array<i64: 1, 8, 128>}]} {
    %c0 = arith.constant 0 : index
    %c0_0 = arith.constant 0 : index
    %c0_1 = arith.constant 0 : index
    %0 = vector.load %arg1[%c0, %c0_0, %c0_1] : memref<1x8x128xbf16, #tpu.memory_space<vmem>>, vector<1x8x128xbf16>
    %1 = vector.shape_cast %0 : vector<1x8x128xbf16> to vector<8x128xbf16>
    %2 = arith.extf %1 : vector<8x128xbf16> to vector<8x128xf32>
    %c0_2 = arith.constant 0 : index
    %c0_3 = arith.constant 0 : index
    %c0_4 = arith.constant 0 : index
    %3 = vector.load %arg2[%c0_2, %c0_3, %c0_4] : memref<1x8x128xbf16, #tpu.memory_space<vmem>>, vector<1x8x128xbf16>
    %4 = vector.shape_cast %3 : vector<1x8x128xbf16> to vector<8x128xbf16>
    %5 = arith.extf %4 : vector<8x128xbf16> to vector<8x128xf32>
    %c0_5 = arith.constant 0 : index
    %c0_6 = arith.constant 0 : index
    %c0_7 = arith.constant 0 : index
    %6 = vector.load %arg3[%c0_5, %c0_6, %c0_7] : memref<1x8x128xbf16, #tpu.memory_space<vmem>>, vector<1x8x128xbf16>
    %7 = vector.shape_cast %6 : vector<1x8x128xbf16> to vector<8x128xbf16>
    %8 = arith.extf %7 : vector<8x128xbf16> to vector<8x128xf32>
    %9 = tpu.concatenate %2, %5, %8 in 0 : vector<8x128xf32>, vector<8x128xf32>, vector<8x128xf32> -> vector<24x128xf32>
    %10 = arith.truncf %9 : vector<24x128xf32> to vector<24x128xbf16>
    %c0_8 = arith.constant 0 : index
    %c0_9 = arith.constant 0 : index
    %11 = vector.load %arg5[%c0_8, %c0_9] : memref<128x384xbf16, #tpu.memory_space<vmem>>, vector<128x384xbf16>
    %cst = arith.constant dense<0.000000e+00> : vector<24x384xf32>
    %12 = tpu.matmul %10, %11, %cst {dimension_numbers = #tpu.dot_dimension_numbers<[1], [0], [0], [1], [0, 0, 1, 1], [], []>} : vector<24x128xbf16>, vector<128x384xbf16>, vector<24x384xf32> -> vector<24x384xf32>
    %c0_10 = arith.constant 0 : index
    %c0_11 = arith.constant 0 : index
    %13 = vector.load %arg6[%c0_10, %c0_11] : memref<1x384xf32, #tpu.memory_space<vmem>>, vector<1x384xf32>
    %14 = vector.broadcast %13 : vector<1x384xf32> to vector<24x384xf32>
    %15 = arith.addf %12, %14 : vector<24x384xf32>
    %16 = vector.extract_strided_slice %15 {offsets = [0, 0], sizes = [8, 128], strides = [1, 1]} : vector<24x384xf32> to vector<8x128xf32>
    %17 = vector.extract_strided_slice %15 {offsets = [8, 128], sizes = [8, 128], strides = [1, 1]} : vector<24x384xf32> to vector<8x128xf32>
    %18 = vector.extract_strided_slice %15 {offsets = [16, 256], sizes = [8, 128], strides = [1, 1]} : vector<24x384xf32> to vector<8x128xf32>
    %19 = arith.truncf %17 : vector<8x128xf32> to vector<8x128xbf16>
    %20 = tpu.iota {dimensions = array<i32: 1>} : vector<1x128xi32>
    %c0_i32 = arith.constant 0 : i32
    %21 = vector.broadcast %c0_i32 : i32 to vector<1x128xi32>
    %22 = arith.cmpi sge, %20, %21 : vector<1x128xi32>
    %c8_i32 = arith.constant 8 : i32
    %23 = vector.broadcast %c8_i32 : i32 to vector<1x128xi32>
    %24 = arith.cmpi slt, %20, %23 : vector<1x128xi32>
    %25 = arith.andi %22, %24 : vector<1x128xi1>
    %26 = arith.extui %25 : vector<1x128xi1> to vector<1x128xi32>
    %27 = arith.sitofp %26 : vector<1x128xi32> to vector<1x128xf32>
    %c8_i32_12 = arith.constant 8 : i32
    %28 = vector.broadcast %c8_i32_12 : i32 to vector<1x128xi32>
    %29 = arith.cmpi sge, %20, %28 : vector<1x128xi32>
    %c16_i32 = arith.constant 16 : i32
    %30 = vector.broadcast %c16_i32 : i32 to vector<1x128xi32>
    %31 = arith.cmpi slt, %20, %30 : vector<1x128xi32>
    %32 = arith.andi %29, %31 : vector<1x128xi1>
    %33 = arith.extui %32 : vector<1x128xi1> to vector<1x128xi32>
    %34 = arith.sitofp %33 : vector<1x128xi32> to vector<1x128xf32>
    %c16_i32_13 = arith.constant 16 : i32
    %35 = vector.broadcast %c16_i32_13 : i32 to vector<1x128xi32>
    %36 = arith.cmpi sge, %20, %35 : vector<1x128xi32>
    %c24_i32 = arith.constant 24 : i32
    %37 = vector.broadcast %c24_i32 : i32 to vector<1x128xi32>
    %38 = arith.cmpi slt, %20, %37 : vector<1x128xi32>
    %39 = arith.andi %36, %38 : vector<1x128xi1>
    %40 = arith.extui %39 : vector<1x128xi1> to vector<1x128xi32>
    %41 = arith.sitofp %40 : vector<1x128xi32> to vector<1x128xf32>
    %c24_i32_14 = arith.constant 24 : i32
    %42 = vector.broadcast %c24_i32_14 : i32 to vector<1x128xi32>
    %43 = arith.cmpi sge, %20, %42 : vector<1x128xi32>
    %c32_i32 = arith.constant 32 : i32
    %44 = vector.broadcast %c32_i32 : i32 to vector<1x128xi32>
    %45 = arith.cmpi slt, %20, %44 : vector<1x128xi32>
    %46 = arith.andi %43, %45 : vector<1x128xi1>
    %47 = arith.extui %46 : vector<1x128xi1> to vector<1x128xi32>
    %48 = arith.sitofp %47 : vector<1x128xi32> to vector<1x128xf32>
    %c0_15 = arith.constant 0 : index
    %c0_16 = arith.constant 0 : index
    %49 = vector.load %arg4[%c0_15, %c0_16] : memref<32x8xf32, #tpu.memory_space<vmem>>, vector<32x8xf32>
    %50 = vector.broadcast %27 : vector<1x128xf32> to vector<8x128xf32>
    %51 = arith.mulf %16, %50 : vector<8x128xf32>
    %52 = vector.broadcast %34 : vector<1x128xf32> to vector<8x128xf32>
    %53 = arith.mulf %16, %52 : vector<8x128xf32>
    %54 = vector.broadcast %41 : vector<1x128xf32> to vector<8x128xf32>
    %55 = arith.mulf %16, %54 : vector<8x128xf32>
    %56 = vector.broadcast %48 : vector<1x128xf32> to vector<8x128xf32>
    %57 = arith.mulf %16, %56 : vector<8x128xf32>
    %58 = tpu.concatenate %51, %53, %55, %57 in 0 : vector<8x128xf32>, vector<8x128xf32>, vector<8x128xf32>, vector<8x128xf32> -> vector<32x128xf32>
    %59 = arith.truncf %58 : vector<32x128xf32> to vector<32x128xbf16>
    %cst_17 = arith.constant dense<0.000000e+00> : vector<32x8xf32>
    %60 = tpu.matmul %59, %19, %cst_17 {dimension_numbers = #tpu.dot_dimension_numbers<[1], [1], [0], [0], [0, 0, 1, 0], [], []>} : vector<32x128xbf16>, vector<8x128xbf16>, vector<32x8xf32> -> vector<32x8xf32>
    %61 = arith.addf %60, %49 : vector<32x8xf32>
    %cst_18 = arith.constant dense<0xFF800000> : vector<32xf32>
    %62 = vector.multi_reduction <maximumf>, %61, %cst_18 [1] : vector<32x8xf32> to vector<32xf32>
    %63 = vector.shape_cast %62 : vector<32xf32> to vector<32x1xf32>
    %64 = vector.broadcast %63 : vector<32x1xf32> to vector<32x8xf32>
    %65 = arith.subf %61, %64 : vector<32x8xf32>
    %66 = math.exp %65 : vector<32x8xf32>
    %cst_19 = arith.constant dense<0.000000e+00> : vector<32xf32>
    %67 = vector.multi_reduction <add>, %66, %cst_19 [1] : vector<32x8xf32> to vector<32xf32>
    %68 = vector.shape_cast %67 : vector<32xf32> to vector<32x1xf32>
    %69 = tpu.reciprocal %68 {approx = true} : vector<32x1xf32> -> vector<32x1xf32>
    %70 = vector.broadcast %69 : vector<32x1xf32> to vector<32x8xf32>
    %71 = arith.mulf %66, %70 : vector<32x8xf32>
    %cst_20 = arith.constant 0.000000e+00 : f32
    %72 = vector.broadcast %cst_20 : f32 to vector<8x128xf32>
    %73 = vector.extract_strided_slice %71 {offsets = [0, 0], sizes = [8, 8], strides = [1, 1]} : vector<32x8xf32> to vector<8x8xf32>
    %74 = arith.truncf %73 : vector<8x8xf32> to vector<8x8xbf16>
    %75 = vector.broadcast %27 : vector<1x128xf32> to vector<8x128xf32>
    %76 = arith.mulf %18, %75 : vector<8x128xf32>
    %77 = arith.truncf %76 : vector<8x128xf32> to vector<8x128xbf16>
    %cst_21 = arith.constant dense<0.000000e+00> : vector<8x128xf32>
    %78 = tpu.matmul %74, %77, %cst_21 {dimension_numbers = #tpu.dot_dimension_numbers<[1], [0], [0], [1], [0, 0, 1, 1], [], []>} : vector<8x8xbf16>, vector<8x128xbf16>, vector<8x128xf32> -> vector<8x128xf32>
    %79 = arith.addf %72, %78 : vector<8x128xf32>
    %80 = vector.extract_strided_slice %71 {offsets = [8, 0], sizes = [8, 8], strides = [1, 1]} : vector<32x8xf32> to vector<8x8xf32>
    %81 = arith.truncf %80 : vector<8x8xf32> to vector<8x8xbf16>
    %82 = vector.broadcast %34 : vector<1x128xf32> to vector<8x128xf32>
    %83 = arith.mulf %18, %82 : vector<8x128xf32>
    %84 = arith.truncf %83 : vector<8x128xf32> to vector<8x128xbf16>
    %cst_22 = arith.constant dense<0.000000e+00> : vector<8x128xf32>
    %85 = tpu.matmul %81, %84, %cst_22 {dimension_numbers = #tpu.dot_dimension_numbers<[1], [0], [0], [1], [0, 0, 1, 1], [], []>} : vector<8x8xbf16>, vector<8x128xbf16>, vector<8x128xf32> -> vector<8x128xf32>
    %86 = arith.addf %79, %85 : vector<8x128xf32>
    %87 = vector.extract_strided_slice %71 {offsets = [16, 0], sizes = [8, 8], strides = [1, 1]} : vector<32x8xf32> to vector<8x8xf32>
    %88 = arith.truncf %87 : vector<8x8xf32> to vector<8x8xbf16>
    %89 = vector.broadcast %41 : vector<1x128xf32> to vector<8x128xf32>
    %90 = arith.mulf %18, %89 : vector<8x128xf32>
    %91 = arith.truncf %90 : vector<8x128xf32> to vector<8x128xbf16>
    %cst_23 = arith.constant dense<0.000000e+00> : vector<8x128xf32>
    %92 = tpu.matmul %88, %91, %cst_23 {dimension_numbers = #tpu.dot_dimension_numbers<[1], [0], [0], [1], [0, 0, 1, 1], [], []>} : vector<8x8xbf16>, vector<8x128xbf16>, vector<8x128xf32> -> vector<8x128xf32>
    %93 = arith.addf %86, %92 : vector<8x128xf32>
    %94 = vector.extract_strided_slice %71 {offsets = [24, 0], sizes = [8, 8], strides = [1, 1]} : vector<32x8xf32> to vector<8x8xf32>
    %95 = arith.truncf %94 : vector<8x8xf32> to vector<8x8xbf16>
    %96 = vector.broadcast %48 : vector<1x128xf32> to vector<8x128xf32>
    %97 = arith.mulf %18, %96 : vector<8x128xf32>
    %98 = arith.truncf %97 : vector<8x128xf32> to vector<8x128xbf16>
    %cst_24 = arith.constant dense<0.000000e+00> : vector<8x128xf32>
    %99 = tpu.matmul %95, %98, %cst_24 {dimension_numbers = #tpu.dot_dimension_numbers<[1], [0], [0], [1], [0, 0, 1, 1], [], []>} : vector<8x8xbf16>, vector<8x128xbf16>, vector<8x128xf32> -> vector<8x128xf32>
    %100 = arith.addf %93, %99 : vector<8x128xf32>
    %101 = arith.truncf %100 : vector<8x128xf32> to vector<8x128xbf16>
    %c0_25 = arith.constant 0 : index
    %c0_26 = arith.constant 0 : index
    %102 = vector.load %arg7[%c0_25, %c0_26] : memref<128x128xbf16, #tpu.memory_space<vmem>>, vector<128x128xbf16>
    %cst_27 = arith.constant dense<0.000000e+00> : vector<8x128xf32>
    %103 = tpu.matmul %101, %102, %cst_27 {dimension_numbers = #tpu.dot_dimension_numbers<[1], [0], [0], [1], [0, 0, 1, 1], [], []>} : vector<8x128xbf16>, vector<128x128xbf16>, vector<8x128xf32> -> vector<8x128xf32>
    %c0_28 = arith.constant 0 : index
    %c0_29 = arith.constant 0 : index
    %104 = vector.load %arg8[%c0_28, %c0_29] : memref<1x128xf32, #tpu.memory_space<vmem>>, vector<1x128xf32>
    %105 = vector.broadcast %104 : vector<1x128xf32> to vector<8x128xf32>
    %106 = arith.addf %103, %105 : vector<8x128xf32>
    %107 = vector.shape_cast %106 : vector<8x128xf32> to vector<1x8x128xf32>
    %c0_30 = arith.constant 0 : index
    %c0_31 = arith.constant 0 : index
    %c0_32 = arith.constant 0 : index
    %108 = vector.load %arg9[%c0_30, %c0_31, %c0_32] : memref<1x8x128xf32, #tpu.memory_space<vmem>>, vector<1x8x128xf32>
    tpu.vector_store %arg9[%c0_30, %c0_31, %c0_32], %107 {strides = array<i32>} : memref<1x8x128xf32, #tpu.memory_space<vmem>>, vector<1x8x128xf32>,
    return
  }
  func.func @transform_0(%arg0: i32) -> (i32, i32, i32) {
    %c0_i32 = arith.constant 0 : i32
    %c0_i32_0 = arith.constant 0 : i32
    %c0_i32_1 = arith.constant 0 : i32
    return %arg0, %c0_i32, %c0_i32_0 : i32, i32, i32
  }
  func.func @transform_1(%arg0: i32) -> (i32, i32, i32) {
    %c0_i32 = arith.constant 0 : i32
    %c0_i32_0 = arith.constant 0 : i32
    %c0_i32_1 = arith.constant 0 : i32
    return %arg0, %c0_i32, %c0_i32_0 : i32, i32, i32
  }
  func.func @transform_2(%arg0: i32) -> (i32, i32, i32) {
    %c0_i32 = arith.constant 0 : i32
    %c0_i32_0 = arith.constant 0 : i32
    %c0_i32_1 = arith.constant 0 : i32
    return %arg0, %c0_i32, %c0_i32_0 : i32, i32, i32
  }
  func.func @transform_3(%arg0: i32) -> (i32, i32) {
    %c0_i32 = arith.constant 0 : i32
    %c0_i32_0 = arith.constant 0 : i32
    %c0_i32_1 = arith.constant 0 : i32
    return %c0_i32, %c0_i32_0 : i32, i32
  }
  func.func @transform_4(%arg0: i32) -> (i32, i32) {
    %c0_i32 = arith.constant 0 : i32
    %c0_i32_0 = arith.constant 0 : i32
    %c0_i32_1 = arith.constant 0 : i32
    return %c0_i32, %c0_i32_0 : i32, i32
  }
  func.func @transform_5(%arg0: i32) -> (i32, i32) {
    %c0_i32 = arith.constant 0 : i32
    %c0_i32_0 = arith.constant 0 : i32
    %c0_i32_1 = arith.constant 0 : i32
    return %c0_i32, %c0_i32_0 : i32, i32
  }
  func.func @transform_6(%arg0: i32) -> (i32, i32) {
    %c0_i32 = arith.constant 0 : i32
    %c0_i32_0 = arith.constant 0 : i32
    %c0_i32_1 = arith.constant 0 : i32
    return %c0_i32, %c0_i32_0 : i32, i32
  }
  func.func @transform_7(%arg0: i32) -> (i32, i32) {
    %c0_i32 = arith.constant 0 : i32
    %c0_i32_0 = arith.constant 0 : i32
    %c0_i32_1 = arith.constant 0 : i32
    return %c0_i32, %c0_i32_0 : i32, i32
  }
  func.func @transform_8(%arg0: i32) -> (i32, i32, i32) {
    %c0_i32 = arith.constant 0 : i32
    %c0_i32_0 = arith.constant 0 : i32
    %c0_i32_1 = arith.constant 0 : i32
    return %arg0, %c0_i32, %c0_i32_0 : i32, i32, i32
  }
}

</mosaic_0001>

<llo_original>
// kernel: tpu_custom_call.1
$region0: #{tpu_custom_call.1}
  #allocation0 [shape = 'u32[]', space=smem, size = 0x4, offset = 0x4, fixed_abs, tag = 'smem constant byte address 0x4 - core index']
  #allocation1 [shape = 'u32[144,128]{1,0:T(1,128)}', space=vmem, size = 0x12000, scoped, tag = 'internal scratch']
  %s0 = inlined_call_operand.vmem [shape: bf16[2,8,128], index: 0, kind: input, shape index: {}]
  %s1 = inlined_call_operand.vmem [shape: bf16[2,8,128], index: 1, kind: input, shape index: {}]
  %s2 = inlined_call_operand.vmem [shape: bf16[2,8,128], index: 2, kind: input, shape index: {}]
  %s3 = inlined_call_operand.vmem [shape: f32[32,8], index: 3, kind: input, shape index: {}]
  %s4 = inlined_call_operand.hbm [shape: bf16[128,384], index: 4, kind: input, shape index: {}]
  %s5 = inlined_call_operand.vmem [shape: f32[1,384], index: 5, kind: input, shape index: {}]
  %s6 = inlined_call_operand.hbm [shape: bf16[128,128], index: 6, kind: input, shape index: {}]
  %s7 = inlined_call_operand.vmem [shape: f32[1,128], index: 7, kind: input, shape index: {}]
  %s8 = inlined_call_operand.hbm [shape: f32[2,8,128], index: 8, kind: output, shape index: {}]
  %s9 = sld [smem:[#allocation0]]
  $region73: #{tpu_custom_call.1} parent=0
    _
  %s11 = ssub.s32 1, %s9
  %s12 = scalar_select 0, %s11, %s9
  $region1: #{tpu_custom_call.1} parent=0
    #allocation2 [shape = 'u8[98304]{0}', space=vmem, size = 0x18000, scoped, tag = 'input window, operand 4, single buffered']
    #allocation3 [shape = 's32[2]{0}', space=sflag, size = 0x8, scoped, tag = 'scoped memory for tpu_custom_call.1']
    #allocation4 [shape = 's32[2]{0}', space=sflag, size = 0x8, scoped, tag = 'scoped memory for tpu_custom_call.1']
    #allocation5 [shape = 'u8[32768]{0}', space=vmem, size = 0x8000, scoped, tag = 'input window, operand 6, single buffered']
    #allocation6 [shape = 's32[1]{0}', space=sflag, size = 0x4, scoped, tag = 'scoped memory for tpu_custom_call.1']
    #allocation7 [shape = 'u8[8192]{0}', space=vmem, size = 0x2000, scoped, tag = 'output window, operand 0']
    %13 = vsyncpa [#allocation3], 0
    %14 = vsyncpa [#allocation6], 0
    %15 = vsyncpa [#allocation4], 0
    %s16 = scalar_lea.sflag [#allocation4], 1
    %17 = vsyncpa %s16, 0
    loop: start=0, step=1, limit=4
    $region2: #{tpu_custom_call.1} parent=1 // loop_pre_header
      _
    $region3: #{tpu_custom_call.1} parent=1 // loop_header
      %s19 = sphi 0, %s23
      %p20 = scmp.ge.s32.totalorder %s19, 4
      %s29 = sphi 0, %s31
      %s32 = sphi 0, %s29
      %s33 = sphi 0, %s32
      %s49 = sphi 0, %s33
      %s55 = sphi 0, %s57
      %s58 = sphi 0, %s55
      %s59 = sphi 0, %s58
      %s75 = sphi 0, %s59
      %s81 = sphi 0, %s83
      %s84 = sphi 0, %s81
      %s85 = sphi 0, %s84
      %s101 = sphi 0, %s85
      %s105 = sphi 0, %s105
      %s107 = sphi 0, %s105
      %s108 = sphi 0, %s107
      %s122 = sphi 0, %s108
      %s126 = sphi 0, %s126
      %s128 = sphi 0, %s126
      %s129 = sphi 0, %s128
      %s143 = sphi 0, %s129
      %s147 = sphi 0, %s147
      %s149 = sphi 0, %s147
      %s150 = sphi 0, %s149
      %s164 = sphi 0, %s150
      %s168 = sphi 0, %s168
      %s170 = sphi 0, %s168
      %s171 = sphi 0, %s170
      %s185 = sphi 0, %s171
      %s189 = sphi 0, %s189
      %s191 = sphi 0, %s189
      %s192 = sphi 0, %s191
      %s206 = sphi 0, %s192
      %s212 = sphi 0, %s214
      %s215 = sphi 0, %s212
      %s216 = sphi 0, %s215
      %s232 = sphi 0, %s216
    $region4: #{tpu_custom_call.1} parent=1 // loop_header_branch
      %22 = sbr.rel (%p20) target = $region8
    $region5: #{tpu_custom_call.1} parent=1 // loop_body
      %s24 = ssub.s32 %s19, 1
      %s25 = ssub.s32 %s19, 2
      %s26 = sadd.s32 %s19, 1
      %s27 = ssub.s32 %s19, %s26
      %p28 = scmp.eq.s32.totalorder %s27, 0
      %s30 = sadd.s32 %s29, 1
      %s31 = scalar_select %p28, %s29, %s30
      %p34 = pneg %p28
      %p35 = scmp.eq.s32.totalorder %s19, 1
      %p36 = por %p34, %p35
      %p37 = scmp.ne.s32.totalorder %s29, %s32
      %p38 = scmp.eq.s32.totalorder %s19, 0
      %p39 = por %p37, %p38
      %p40 = scmp.ne.s32.totalorder %s29, %s32
      %p41 = scmp.eq.s32.totalorder %s24, 1
      %p42 = por %p40, %p41
      %p43 = scmp.ne.s32.totalorder %s32, %s33
      %p44 = scmp.eq.s32.totalorder %s24, 0
      %p45 = por %p43, %p44
      %p46 = scmp.ne.s32.totalorder %s32, %s33
      %p47 = scmp.eq.s32.totalorder %s25, 1
      %p48 = por %p46, %p47
      %p50 = scmp.ne.s32.totalorder %s33, %s49
      %p51 = scmp.eq.s32.totalorder %s25, 0
      %p52 = por %p50, %p51
      %s53 = ssub.s32 %s19, %s26
      %p54 = scmp.eq.s32.totalorder %s53, 0
      %s56 = sadd.s32 %s55, 1
      %s57 = scalar_select %p54, %s55, %s56
      %p60 = pneg %p54
      %p61 = scmp.eq.s32.totalorder %s19, 1
      %p62 = por %p60, %p61
      %p63 = scmp.ne.s32.totalorder %s55, %s58
      %p64 = scmp.eq.s32.totalorder %s19, 0
      %p65 = por %p63, %p64
      %p66 = scmp.ne.s32.totalorder %s55, %s58
      %p67 = scmp.eq.s32.totalorder %s24, 1
      %p68 = por %p66, %p67
      %p69 = scmp.ne.s32.totalorder %s58, %s59
      %p70 = scmp.eq.s32.totalorder %s24, 0
      %p71 = por %p69, %p70
      %p72 = scmp.ne.s32.totalorder %s58, %s59
      %p73 = scmp.eq.s32.totalorder %s25, 1
      %p74 = por %p72, %p73
      %p76 = scmp.ne.s32.totalorder %s59, %s75
      %p77 = scmp.eq.s32.totalorder %s25, 0
      %p78 = por %p76, %p77
      %s79 = ssub.s32 %s19, %s26
      %p80 = scmp.eq.s32.totalorder %s79, 0
      %s82 = sadd.s32 %s81, 1
      %s83 = scalar_select %p80, %s81, %s82
      %p86 = pneg %p80
      %p87 = scmp.eq.s32.totalorder %s19, 1
      %p88 = por %p86, %p87
      %p89 = scmp.ne.s32.totalorder %s81, %s84
      %p90 = scmp.eq.s32.totalorder %s19, 0
      %p91 = por %p89, %p90
      %p92 = scmp.ne.s32.totalorder %s81, %s84
      %p93 = scmp.eq.s32.totalorder %s24, 1
      %p94 = por %p92, %p93
      %p95 = scmp.ne.s32.totalorder %s84, %s85
      %p96 = scmp.eq.s32.totalorder %s24, 0
      %p97 = por %p95, %p96
      %p98 = scmp.ne.s32.totalorder %s84, %s85
      %p99 = scmp.eq.s32.totalorder %s25, 1
      %p100 = por %p98, %p99
      %p102 = scmp.ne.s32.totalorder %s85, %s101
      %p103 = scmp.eq.s32.totalorder %s25, 0
      %p104 = por %p102, %p103
      %s106 = sadd.s32 %s105, 1
      %p109 = scmp.eq.s32.totalorder %s19, 1
      %p110 = scmp.ne.s32.totalorder %s105, %s107
      %p111 = scmp.eq.s32.totalorder %s19, 0
      %p112 = por %p110, %p111
      %p113 = scmp.ne.s32.totalorder %s105, %s107
      %p114 = scmp.eq.s32.totalorder %s24, 1
      %p115 = por %p113, %p114
      %p116 = scmp.ne.s32.totalorder %s107, %s108
      %p117 = scmp.eq.s32.totalorder %s24, 0
      %p118 = por %p116, %p117
      %p119 = scmp.ne.s32.totalorder %s107, %s108
      %p120 = scmp.eq.s32.totalorder %s25, 1
      %p121 = por %p119, %p120
      %p123 = scmp.ne.s32.totalorder %s108, %s122
      %p124 = scmp.eq.s32.totalorder %s25, 0
      %p125 = por %p123, %p124
      %s127 = sadd.s32 %s126, 1
      %p130 = scmp.eq.s32.totalorder %s19, 1
      %p131 = scmp.ne.s32.totalorder %s126, %s128
      %p132 = scmp.eq.s32.totalorder %s19, 0
      %p133 = por %p131, %p132
      %p134 = scmp.ne.s32.totalorder %s126, %s128
      %p135 = scmp.eq.s32.totalorder %s24, 1
      %p136 = por %p134, %p135
      %p137 = scmp.ne.s32.totalorder %s128, %s129
      %p138 = scmp.eq.s32.totalorder %s24, 0
      %p139 = por %p137, %p138
      %p140 = scmp.ne.s32.totalorder %s128, %s129
      %p141 = scmp.eq.s32.totalorder %s25, 1
      %p142 = por %p140, %p141
      %p144 = scmp.ne.s32.totalorder %s129, %s143
      %p145 = scmp.eq.s32.totalorder %s25, 0
      %p146 = por %p144, %p145
      %s148 = sadd.s32 %s147, 1
      %p151 = scmp.eq.s32.totalorder %s19, 1
      %p152 = scmp.ne.s32.totalorder %s147, %s149
      %p153 = scmp.eq.s32.totalorder %s19, 0
      %p154 = por %p152, %p153
      %p155 = scmp.ne.s32.totalorder %s147, %s149
      %p156 = scmp.eq.s32.totalorder %s24, 1
      %p157 = por %p155, %p156
      %p158 = scmp.ne.s32.totalorder %s149, %s150
      %p159 = scmp.eq.s32.totalorder %s24, 0
      %p160 = por %p158, %p159
      %p161 = scmp.ne.s32.totalorder %s149, %s150
      %p162 = scmp.eq.s32.totalorder %s25, 1
      %p163 = por %p161, %p162
      %p165 = scmp.ne.s32.totalorder %s150, %s164
      %p166 = scmp.eq.s32.totalorder %s25, 0
      %p167 = por %p165, %p166
      %s169 = sadd.s32 %s168, 1
      %p172 = scmp.eq.s32.totalorder %s19, 1
      %p173 = scmp.ne.s32.totalorder %s168, %s170
      %p174 = scmp.eq.s32.totalorder %s19, 0
      %p175 = por %p173, %p174
      %p176 = scmp.ne.s32.totalorder %s168, %s170
      %p177 = scmp.eq.s32.totalorder %s24, 1
      %p178 = por %p176, %p177
      %p179 = scmp.ne.s32.totalorder %s170, %s171
      %p180 = scmp.eq.s32.totalorder %s24, 0
      %p181 = por %p179, %p180
      %p182 = scmp.ne.s32.totalorder %s170, %s171
      %p183 = scmp.eq.s32.totalorder %s25, 1
      %p184 = por %p182, %p183
      %p186 = scmp.ne.s32.totalorder %s171, %s185
      %p187 = scmp.eq.s32.totalorder %s25, 0
      %p188 = por %p186, %p187
      %s190 = sadd.s32 %s189, 1
      %p193 = scmp.eq.s32.totalorder %s19, 1
      %p194 = scmp.ne.s32.totalorder %s189, %s191
      %p195 = scmp.eq.s32.totalorder %s19, 0
      %p196 = por %p194, %p195
      %p197 = scmp.ne.s32.totalorder %s189, %s191
      %p198 = scmp.eq.s32.totalorder %s24, 1
      %p199 = por %p197, %p198
      %p200 = scmp.ne.s32.totalorder %s191, %s192
      %p201 = scmp.eq.s32.totalorder %s24, 0
      %p202 = por %p200, %p201
      %p203 = scmp.ne.s32.totalorder %s191, %s192
      %p204 = scmp.eq.s32.totalorder %s25, 1
      %p205 = por %p203, %p204
      %p207 = scmp.ne.s32.totalorder %s192, %s206
      %p208 = scmp.eq.s32.totalorder %s25, 0
      %p209 = por %p207, %p208
      %s210 = ssub.s32 %s19, %s26
      %p211 = scmp.eq.s32.totalorder %s210, 0
      %s213 = sadd.s32 %s212, 1
      %s214 = scalar_select %p211, %s212, %s213
      %p217 = pneg %p211
      %p218 = scmp.eq.s32.totalorder %s19, 1
      %p219 = por %p217, %p218
      %p220 = scmp.ne.s32.totalorder %s212, %s215
      %p221 = scmp.eq.s32.totalorder %s19, 0
      %p222 = por %p220, %p221
      %p223 = scmp.ne.s32.totalorder %s212, %s215
      %p224 = scmp.eq.s32.totalorder %s24, 1
      %p225 = por %p223, %p224
      %p226 = scmp.ne.s32.totalorder %s215, %s216
      %p227 = scmp.eq.s32.totalorder %s24, 0
      %p228 = por %p226, %p227
      %p229 = scmp.ne.s32.totalorder %s215, %s216
      %p230 = scmp.eq.s32.totalorder %s25, 1
      %p231 = por %p229, %p230
      %p233 = scmp.ne.s32.totalorder %s216, %s232
      %p234 = scmp.eq.s32.totalorder %s25, 0
      %p235 = por %p233, %p234
      %p236 = scmp.le.s32.totalorder 1, %s19
      %p237 = scmp.lt.s32.totalorder %s19, 3
      %p238 = pnand %p236, %p237
      %p239 = pneg %p238
      // Predicated region
      $region9: #{tpu_custom_call.1} parent=5 // pred_check
        _
      $region10: #{tpu_custom_call.1} parent=5 // pred_check_branch
        %241 = sbr.rel (%p238) target = $region12
      $region11: #{tpu_custom_call.1} parent=5 // pred_region
        %s242 = ssub.s32 %s19, 1
        // Predicated region
        $region13: #{tpu_custom_call.1} parent=11 // pred_check
          %p243 = pneg %p118
        $region14: #{tpu_custom_call.1} parent=11 // pred_check_branch
          %245 = sbr.rel (%p243) target = $region16
        $region15: #{tpu_custom_call.1} parent=11 // pred_region
          _
        $region16: #{tpu_custom_call.1} parent=11 // pred_fallthru
          _
        // Predicated region
        $region17: #{tpu_custom_call.1} parent=11 // pred_check
          %p246 = pneg %p139
        $region18: #{tpu_custom_call.1} parent=11 // pred_check_branch
          %248 = sbr.rel (%p246) target = $region20
        $region19: #{tpu_custom_call.1} parent=11 // pred_region
          %s250 = ssub.s32 3072, 3072
          %251 = vsyncadd [#allocation3], %s250
          %s252 = sshll.u32 [#allocation2], 4
          %s253 = int_to_ptr.vmem [resolvable:$true] %s252
          %258 = dma.hbm_to_vmem [thread:$0]  %s4, 3072, %s253, [#allocation3], 192, 192, 12
        $region20: #{tpu_custom_call.1} parent=11 // pred_fallthru
          _
        // Predicated region
        $region21: #{tpu_custom_call.1} parent=11 // pred_check
          %p259 = pneg %p160
        $region22: #{tpu_custom_call.1} parent=11 // pred_check_branch
          %261 = sbr.rel (%p259) target = $region24
        $region23: #{tpu_custom_call.1} parent=11 // pred_region
          _
        $region24: #{tpu_custom_call.1} parent=11 // pred_fallthru
          _
        // Predicated region
        $region25: #{tpu_custom_call.1} parent=11 // pred_check
          %p262 = pneg %p181
        $region26: #{tpu_custom_call.1} parent=11 // pred_check_branch
          %264 = sbr.rel (%p262) target = $region28
        $region27: #{tpu_custom_call.1} parent=11 // pred_region
          %s266 = ssub.s32 1024, 1024
          %267 = vsyncadd [#allocation6], %s266
          %s268 = sshll.u32 [#allocation5], 4
          %s269 = int_to_ptr.vmem [resolvable:$true] %s268
          %274 = dma.hbm_to_vmem [thread:$0]  %s6, 1024, %s269, [#allocation6], 64, 64, 4
        $region28: #{tpu_custom_call.1} parent=11 // pred_fallthru
          _
        // Predicated region
        $region29: #{tpu_custom_call.1} parent=11 // pred_check
          %p275 = pneg %p202
        $region30: #{tpu_custom_call.1} parent=11 // pred_check_branch
          %277 = sbr.rel (%p275) target = $region32
        $region31: #{tpu_custom_call.1} parent=11 // pred_region
          _
        $region32: #{tpu_custom_call.1} parent=11 // pred_fallthru
          _
      $region12: #{tpu_custom_call.1} parent=5 // pred_fallthru
        _
      %p278 = scmp.lt.s32.totalorder %s19, 2
      // Predicated region
      $region33: #{tpu_custom_call.1} parent=5 // pred_check
        %p279 = pneg %p278
      $region34: #{tpu_custom_call.1} parent=5 // pred_check_branch
        %281 = sbr.rel (%p279) target = $region36
      $region35: #{tpu_custom_call.1} parent=5 // pred_region
        // Predicated region
        $region37: #{tpu_custom_call.1} parent=35 // pred_check
          %p282 = pneg %p39
        $region38: #{tpu_custom_call.1} parent=35 // pred_check_branch
          %284 = sbr.rel (%p282) target = $region40
        $region39: #{tpu_custom_call.1} parent=35 // pred_region
          %p285 = scmp.lt.s32.totalorder %s19, 1
          %s286 = scalar_select %p285, %s19, 1
          %s287 = smul.addr %s286, 4
          %s288 = scalar_lea.vmem %s0, %s287
        $region40: #{tpu_custom_call.1} parent=35 // pred_fallthru
          _
        // Predicated region
        $region41: #{tpu_custom_call.1} parent=35 // pred_check
          %p289 = pneg %p65
        $region42: #{tpu_custom_call.1} parent=35 // pred_check_branch
          %291 = sbr.rel (%p289) target = $region44
        $region43: #{tpu_custom_call.1} parent=35 // pred_region
          %p292 = scmp.lt.s32.totalorder %s19, 1
          %s293 = scalar_select %p292, %s19, 1
          %s294 = smul.addr %s293, 4
          %s295 = scalar_lea.vmem %s1, %s294
        $region44: #{tpu_custom_call.1} parent=35 // pred_fallthru
          _
        // Predicated region
        $region45: #{tpu_custom_call.1} parent=35 // pred_check
          %p296 = pneg %p91
        $region46: #{tpu_custom_call.1} parent=35 // pred_check_branch
          %298 = sbr.rel (%p296) target = $region48
        $region47: #{tpu_custom_call.1} parent=35 // pred_region
          %p299 = scmp.lt.s32.totalorder %s19, 1
          %s300 = scalar_select %p299, %s19, 1
          %s301 = smul.addr %s300, 4
          %s302 = scalar_lea.vmem %s2, %s301
        $region48: #{tpu_custom_call.1} parent=35 // pred_fallthru
          _
      $region36: #{tpu_custom_call.1} parent=5 // pred_fallthru
        _
      %p303 = scmp.le.s32.totalorder 1, %s19
      %p304 = scmp.lt.s32.totalorder %s19, 3
      %p305 = pnand %p303, %p304
      %p306 = pneg %p305
      // Predicated region
      $region49: #{tpu_custom_call.1} parent=5 // pred_check
        _
      $region50: #{tpu_custom_call.1} parent=5 // pred_check_branch
        %308 = sbr.rel (%p305) target = $region52
      $region51: #{tpu_custom_call.1} parent=5 // pred_region
        %s309 = ssub.s32 %s19, 1
        // Predicated region
        $region53: #{tpu_custom_call.1} parent=51 // pred_check
          %p310 = pneg %p139
        $region54: #{tpu_custom_call.1} parent=51 // pred_check_branch
          %312 = sbr.rel (%p310) target = $region56
        $region55: #{tpu_custom_call.1} parent=51 // pred_region
          %313 = dma.done [#allocation3], 3072
        $region56: #{tpu_custom_call.1} parent=51 // pred_fallthru
          _
        // Predicated region
        $region57: #{tpu_custom_call.1} parent=51 // pred_check
          %p314 = pneg %p181
        $region58: #{tpu_custom_call.1} parent=51 // pred_check_branch
          %316 = sbr.rel (%p314) target = $region60
        $region59: #{tpu_custom_call.1} parent=51 // pred_region
          %317 = dma.done [#allocation6], 1024
        $region60: #{tpu_custom_call.1} parent=51 // pred_fallthru
          _
        %p318 = scmp.lt.s32.totalorder %s24, 1
        %s319 = scalar_select %p318, %s24, 1
        %s320 = smul.addr %s319, 4
        %s321 = scalar_lea.vmem %s0, %s320
        %p322 = pneg %p45
        %p323 = pneg %p42
        %p324 = scmp.lt.s32.totalorder %s24, 1
        %s325 = scalar_select %p324, %s24, 1
        %s326 = smul.addr %s325, 4
        %s327 = scalar_lea.vmem %s1, %s326
        %p328 = pneg %p71
        %p329 = pneg %p68
        %p330 = scmp.lt.s32.totalorder %s24, 1
        %s331 = scalar_select %p330, %s24, 1
        %s332 = smul.addr %s331, 4
        %s333 = scalar_lea.vmem %s2, %s332
        %p334 = pneg %p97
        %p335 = pneg %p94
        %p336 = pneg %p118
        %p337 = pneg %p115
        %p338 = pneg %p139
        %p339 = pneg %p136
        %p340 = pneg %p160
        %p341 = pneg %p157
        %p342 = pneg %p181
        %p343 = pneg %p178
        %p344 = pneg %p202
        %p345 = pneg %p199
        %p346 = pneg %p228
        %p347 = pneg %p225
        %s348 = sand.u32 %s215, 1
        %s349 = scalar_lea.sflag [#allocation4], %s348
        %s350 = sand.u32 %s215, 1
        %s351 = smul.addr %s350, 8
        %s352 = scalar_lea.vmem [#allocation7], %s351
        %p353 = scmp.lt.s32.totalorder %s24, 1
        %s354 = scalar_select %p353, %s24, 1
        %s355 = smul.addr %s354, 4
        %s356 = scalar_lea.vmem %s0, %s355
        %p357 = scmp.lt.s32.totalorder %s24, 1
        %s358 = scalar_select %p357, %s24, 1
        %s359 = smul.addr %s358, 4
        %s360 = scalar_lea.vmem %s1, %s359
        %p361 = scmp.lt.s32.totalorder %s24, 1
        %s362 = scalar_select %p361, %s24, 1
        %s363 = smul.addr %s362, 4
        %s364 = scalar_lea.vmem %s2, %s363
        %v366 = vld [vmem:[%s356] sm:$0xf]
        %v367 = vunpack.c.l.bf16 %v366
        %v368 = vld [vmem:[%s360] sm:$0xf]
        %v369 = vunpack.c.l.bf16 %v368
        %v370 = vld [vmem:[%s364] sm:$0xf]
        %v371 = vunpack.c.l.bf16 %v370
        %v372 = vpack.c.bf16 %v369, %v367
        %v373 = vpack.c.bf16 %v371, %v371
        %v374 = vld [vmem:[#allocation2] sm:$0xff]
        %v375 = vld [vmem:[#allocation2 + $0x8] sm:$0xf]
        %v376 = vld [vmem:[#allocation2 + $0xc] sm:$0xff]
        %v377 = vld [vmem:[#allocation2 + $0x14] sm:$0xf]
        %v378 = vld [vmem:[#allocation2 + $0x18] sm:$0xff]
        %v379 = vld [vmem:[#allocation2 + $0x20] sm:$0xf]
        %v380 = vld [vmem:[#allocation2 + $0x24] sm:$0xff]
        %v381 = vld [vmem:[#allocation2 + $0x2c] sm:$0xf]
        %v382 = vld [vmem:[#allocation2 + $0x30] sm:$0xff]
        %v383 = vld [vmem:[#allocation2 + $0x38] sm:$0xf]
        %v384 = vld [vmem:[#allocation2 + $0x3c] sm:$0xff]
        %v385 = vld [vmem:[#allocation2 + $0x44] sm:$0xf]
        %v386 = vld [vmem:[#allocation2 + $0x48] sm:$0xff]
        %v387 = vld [vmem:[#allocation2 + $0x50] sm:$0xf]
        %v388 = vld [vmem:[#allocation2 + $0x54] sm:$0xff]
        %v389 = vld [vmem:[#allocation2 + $0x5c] sm:$0xf]
        %v390 = vld [vmem:[#allocation2 + $0x60] sm:$0xff]
        %v391 = vld [vmem:[#allocation2 + $0x68] sm:$0xf]
        %v392 = vld [vmem:[#allocation2 + $0x6c] sm:$0xff]
        %v393 = vld [vmem:[#allocation2 + $0x74] sm:$0xf]
        %v394 = vld [vmem:[#allocation2 + $0x78] sm:$0xff]
        %v395 = vld [vmem:[#allocation2 + $0x80] sm:$0xf]
        %v396 = vld [vmem:[#allocation2 + $0x84] sm:$0xff]
        %v397 = vld [vmem:[#allocation2 + $0x8c] sm:$0xf]
        %v398 = vld [vmem:[#allocation2 + $0x90] sm:$0xff]
        %v399 = vld [vmem:[#allocation2 + $0x98] sm:$0xf]
        %v400 = vld [vmem:[#allocation2 + $0x9c] sm:$0xff]
        %v401 = vld [vmem:[#allocation2 + $0xa4] sm:$0xf]
        %v402 = vld [vmem:[#allocation2 + $0xa8] sm:$0xff]
        %v403 = vld [vmem:[#allocation2 + $0xb0] sm:$0xf]
        %v404 = vld [vmem:[#allocation2 + $0xb4] sm:$0xff]
        %v405 = vld [vmem:[#allocation2 + $0xbc] sm:$0xf]
        %v406 = vld [vmem:[%s5] sm:$0x7]
        %v408 = vlaneseq
        %v409 = vshrl.u32 %v408, 7
        %v410 = vsub.s32 0, %v409
        %v411 = vrot.slane %v406, %v410
        %v412 = vlaneseq
        %v413 = vshrl.u32 %v412, 7
        %v414 = vsub.s32 1, %v413
        %v415 = vrot.slane %v406, %v414
        %v416 = vlaneseq
        %v417 = vshrl.u32 %v416, 7
        %v418 = vsub.s32 2, %v417
        %v419 = vrot.slane %v406, %v418
        %v455 = vunpack.c.l.b16 %v374
        %v456 = vunpack.c.h.b16 %v374
        %v457 = vunpack.c.l.b16 %v375
        %v458 = vunpack.c.l.b16 %v376
        %v459 = vunpack.c.h.b16 %v376
        %v460 = vunpack.c.l.b16 %v377
        %v461 = vunpack.c.l.b16 %v378
        %v462 = vunpack.c.h.b16 %v378
        %v463 = vunpack.c.l.b16 %v379
        %v464 = vunpack.c.l.b16 %v380
        %v465 = vunpack.c.h.b16 %v380
        %v466 = vunpack.c.l.b16 %v381
        %v467 = vunpack.c.l.b16 %v382
        %v468 = vunpack.c.h.b16 %v382
        %v469 = vunpack.c.l.b16 %v383
        %v470 = vunpack.c.l.b16 %v384
        %v471 = vunpack.c.h.b16 %v384
        %v472 = vunpack.c.l.b16 %v385
        %v473 = vunpack.c.l.b16 %v386
        %v474 = vunpack.c.h.b16 %v386
        %v475 = vunpack.c.l.b16 %v387
        %v476 = vunpack.c.l.b16 %v388
        %v477 = vunpack.c.h.b16 %v388
        %v478 = vunpack.c.l.b16 %v389
        %v479 = vunpack.c.l.b16 %v390
        %v480 = vunpack.c.h.b16 %v390
        %v481 = vunpack.c.l.b16 %v391
        %v482 = vunpack.c.l.b16 %v392
        %v483 = vunpack.c.h.b16 %v392
        %v484 = vunpack.c.l.b16 %v393
        %v485 = vunpack.c.l.b16 %v394
        %v486 = vunpack.c.h.b16 %v394
        %v487 = vunpack.c.l.b16 %v395
        %v488 = vunpack.c.l.b16 %v396
        %v489 = vunpack.c.h.b16 %v396
        %v490 = vunpack.c.l.b16 %v397
        %v491 = vunpack.c.l.b16 %v398
        %v492 = vunpack.c.h.b16 %v398
        %v493 = vunpack.c.l.b16 %v399
        %v494 = vunpack.c.l.b16 %v400
        %v495 = vunpack.c.h.b16 %v400
        %v496 = vunpack.c.l.b16 %v401
        %v497 = vunpack.c.l.b16 %v402
        %v498 = vunpack.c.h.b16 %v402
        %v499 = vunpack.c.l.b16 %v403
        %v500 = vunpack.c.l.b16 %v404
        %v501 = vunpack.c.h.b16 %v404
        %v502 = vunpack.c.l.b16 %v405
        %v503 = vpack.c.b16 %v458, %v455
        %v504 = vpack.c.b16 %v459, %v456
        %v505 = vpack.c.b16 %v460, %v457
        %v506 = vpack.c.b16 %v464, %v461
        %v507 = vpack.c.b16 %v465, %v462
        %v508 = vpack.c.b16 %v466, %v463
        %v509 = vpack.c.b16 %v470, %v467
        %v510 = vpack.c.b16 %v471, %v468
        %v511 = vpack.c.b16 %v472, %v469
        %v512 = vpack.c.b16 %v476, %v473
        %v513 = vpack.c.b16 %v477, %v474
        %v514 = vpack.c.b16 %v478, %v475
        %v515 = vpack.c.b16 %v482, %v479
        %v516 = vpack.c.b16 %v483, %v480
        %v517 = vpack.c.b16 %v484, %v481
        %v518 = vpack.c.b16 %v488, %v485
        %v519 = vpack.c.b16 %v489, %v486
        %v520 = vpack.c.b16 %v490, %v487
        %v521 = vpack.c.b16 %v494, %v491
        %v522 = vpack.c.b16 %v495, %v492
        %v523 = vpack.c.b16 %v496, %v493
        %v524 = vpack.c.b16 %v500, %v497
        %v525 = vpack.c.b16 %v501, %v498
        %v526 = vpack.c.b16 %v502, %v499
        %551 = vmatprep.subr.bf16.mxu0 %v525
        %552 = vmatpush1.bf16.msra.mxu0 %v524
        %553 = vmatprep.subr.bf16.mxu0 %v522
        %554 = vmatpush1.bf16.msra.mxu0 %v521
        %555 = vmatprep.subr.bf16.mxu0 %v519
        %556 = vmatpush1.bf16.msra.mxu0 %v518
        %557 = vmatprep.subr.bf16.mxu0 %v516
        %558 = vmatpush1.bf16.msra.mxu0 %v515
        %559 = vmatprep.subr.bf16.mxu0 %v513
        %560 = vmatpush1.bf16.msra.mxu0 %v512
        %561 = vmatprep.subr.bf16.mxu0 %v510
        %562 = vmatpush1.bf16.msra.mxu0 %v509
        %563 = vmatprep.subr.bf16.mxu0 %v507
        %564 = vmatpush1.bf16.msra.mxu0 %v506
        %565 = vmatprep.subr.bf16.mxu0 %v504
        %566 = vmatpush1.bf16.msra.mxu0 %v503
        %567 = vmatprep.subr.bf16.mxu0 0
        %568 = vmatpush2.bf16.msra.mxu0 0
        %569 = vmatprep.subr.bf16.mxu0 0
        %570 = vmatpush2.bf16.msra.mxu0 0
        %571 = vmatprep.subr.bf16.mxu0 0
        %572 = vmatpush2.bf16.msra.mxu0 0
        %573 = vmatprep.subr.bf16.mxu0 0
        %574 = vmatpush2.bf16.msra.mxu0 0
        %575 = vmatprep.subr.bf16.mxu0 0
        %576 = vmatpush2.bf16.msra.mxu0 0
        %577 = vmatprep.subr.bf16.mxu0 0
        %578 = vmatpush2.bf16.msra.mxu0 0
        %579 = vmatprep.subr.bf16.mxu0 0
        %580 = vmatpush2.bf16.msra.mxu0 0
        %581 = vmatprep.subr.bf16.mxu0 0
        %582 = vmatpush2.bf16.msra.mxu0 0
        %583 = vmatprep.mubr.bf16.mxu0 0
        %584 = vmatmul.mubr.bf16.gmra.mxu0 %v372
        %v585 = vpop.f32.mrf.mxu0
        %v586 = vadd.f32 %v411, %v585
        %v587 = vpop.f32.mrf.mxu0
        %v588 = vpop.f32.mrf.mxu0
        %v589 = vpop.f32.mrf.mxu0
        %v590 = vadd.f32 %v415, %v589
        %591 = vmatprep.mubr.bf16.mxu0 0
        %592 = vmatmul.mubr.bf16.gmra.mxu0 %v373
        %v593 = vpop.f32.mrf.mxu0
        %v594 = vpop.f32.mrf.mxu0
        %v595 = vpop.f32.mrf.mxu0
        %v596 = vpop.f32.mrf.mxu0
        %597 = vdwg.mxu0
        %598 = vmatprep.subr.bf16.mxu0 0
        %599 = vmatpush1.bf16.msra.mxu0 %v526
        %600 = vmatprep.subr.bf16.mxu0 0
        %601 = vmatpush1.bf16.msra.mxu0 %v523
        %602 = vmatprep.subr.bf16.mxu0 0
        %603 = vmatpush1.bf16.msra.mxu0 %v520
        %604 = vmatprep.subr.bf16.mxu0 0
        %605 = vmatpush1.bf16.msra.mxu0 %v517
        %606 = vmatprep.subr.bf16.mxu0 0
        %607 = vmatpush1.bf16.msra.mxu0 %v514
        %608 = vmatprep.subr.bf16.mxu0 0
        %609 = vmatpush1.bf16.msra.mxu0 %v511
        %610 = vmatprep.subr.bf16.mxu0 0
        %611 = vmatpush1.bf16.msra.mxu0 %v508
        %612 = vmatprep.subr.bf16.mxu0 0
        %613 = vmatpush1.bf16.msra.mxu0 %v505
        %614 = vmatprep.subr.bf16.mxu0 0
        %615 = vmatpush2.bf16.msra.mxu0 0
        %616 = vmatprep.subr.bf16.mxu0 0
        %617 = vmatpush2.bf16.msra.mxu0 0
        %618 = vmatprep.subr.bf16.mxu0 0
        %619 = vmatpush2.bf16.msra.mxu0 0
        %620 = vmatprep.subr.bf16.mxu0 0
        %621 = vmatpush2.bf16.msra.mxu0 0
        %622 = vmatprep.subr.bf16.mxu0 0
        %623 = vmatpush2.bf16.msra.mxu0 0
        %624 = vmatprep.subr.bf16.mxu0 0
        %625 = vmatpush2.bf16.msra.mxu0 0
        %626 = vmatprep.subr.bf16.mxu0 0
        %627 = vmatpush2.bf16.msra.mxu0 0
        %628 = vmatprep.subr.bf16.mxu0 0
        %629 = vmatpush2.bf16.msra.mxu0 0
        %630 = vmatprep.mubr.bf16.mxu0 0
        %631 = vmatmul.mubr.bf16.gmra.mxu0 %v372
        %v632 = vpop.f32.mrf.mxu0
        %v633 = vpop.f32.mrf.mxu0
        %v634 = vpop.f32.mrf.mxu0
        %v635 = vpop.f32.mrf.mxu0
        %636 = vmatprep.mubr.bf16.mxu0 0
        %637 = vmatmul.mubr.bf16.gmra.mxu0 %v373
        %v638 = vpop.f32.mrf.mxu0
        %v639 = vadd.f32 %v419, %v638
        %v640 = vpop.f32.mrf.mxu0
        %v641 = vpop.f32.mrf.mxu0
        %v642 = vpop.f32.mrf.mxu0
        %643 = vdwg.mxu0
        %v644 = vpack.c.bf16 %v590, %v590
        %v645 = vlaneseq
        %v646 = vand.u32 %v645, 127
        %vm647 = vcmp.ge.s32.totalorder %v646, 0
        %vm648 = vcmp.lt.s32.totalorder %v646, 8
        %vm649 = vmand %vm647, %vm648
        %v650 = vsel %vm649, 1, 0
        %v651 = vcvt.s32.f32 %v650
        %vm652 = vcmp.ge.s32.totalorder %v646, 8
        %vm653 = vcmp.lt.s32.totalorder %v646, 16
        %vm654 = vmand %vm652, %vm653
        %v655 = vsel %vm654, 1, 0
        %v656 = vcvt.s32.f32 %v655
        %vm657 = vcmp.ge.s32.totalorder %v646, 16
        %vm658 = vcmp.lt.s32.totalorder %v646, 24
        %vm659 = vmand %vm657, %vm658
        %v660 = vsel %vm659, 1, 0
        %v661 = vcvt.s32.f32 %v660
        %vm662 = vcmp.ge.s32.totalorder %v646, 24
        %vm663 = vcmp.lt.s32.totalorder %v646, 32
        %vm664 = vmand %vm662, %vm663
        %v665 = vsel %vm664, 1, 0
        %v666 = vcvt.s32.f32 %v665
        %v667 = vld [vmem:[%s3] sm:$0xff]
        %v668 = vld [vmem:[%s3 + $0x8] sm:$0xff]
        %v669 = vld [vmem:[%s3 + $0x10] sm:$0xff]
        %v670 = vld [vmem:[%s3 + $0x18] sm:$0xff]
        %v671 = vmul.f32 %v586, %v651
        %v672 = vmul.f32 %v586, %v656
        %v673 = vmul.f32 %v586, %v661
        %v674 = vmul.f32 %v586, %v666
        %v675 = vpack.c.bf16 %v672, %v671
        %v676 = vpack.c.bf16 %v674, %v673
        %677 = vmatprep.subr.bf16.mxu0 0
        %678 = vmatpush1.bf16.xpose.msra.mxu0 0
        %679 = vmatprep.subr.bf16.mxu0 0
        %680 = vmatpush1.bf16.xpose.msra.mxu0 0
        %681 = vmatprep.subr.bf16.mxu0 0
        %682 = vmatpush1.bf16.xpose.msra.mxu0 0
        %683 = vmatprep.subr.bf16.mxu0 0
        %684 = vmatpush1.bf16.xpose.msra.mxu0 0
        %685 = vmatprep.subr.bf16.mxu0 0
        %686 = vmatpush1.bf16.xpose.msra.mxu0 0
        %687 = vmatprep.subr.bf16.mxu0 0
        %688 = vmatpush1.bf16.xpose.msra.mxu0 0
        %689 = vmatprep.subr.bf16.mxu0 0
        %690 = vmatpush1.bf16.xpose.msra.mxu0 0
        %691 = vmatprep.subr.bf16.mxu0 0
        %692 = vmatpush1.bf16.xpose.msra.mxu0 %v644
        %693 = vmatprep.subr.bf16.mxu0 0
        %694 = vmatpush2.bf16.xpose.msra.mxu0 0
        %695 = vmatprep.subr.bf16.mxu0 0
        %696 = vmatpush2.bf16.xpose.msra.mxu0 0
        %697 = vmatprep.subr.bf16.mxu0 0
        %698 = vmatpush2.bf16.xpose.msra.mxu0 0
        %699 = vmatprep.subr.bf16.mxu0 0
        %700 = vmatpush2.bf16.xpose.msra.mxu0 0
        %701 = vmatprep.subr.bf16.mxu0 0
        %702 = vmatpush2.bf16.xpose.msra.mxu0 0
        %703 = vmatprep.subr.bf16.mxu0 0
        %704 = vmatpush2.bf16.xpose.msra.mxu0 0
        %705 = vmatprep.subr.bf16.mxu0 0
        %706 = vmatpush2.bf16.xpose.msra.mxu0 0
        %707 = vmatprep.subr.bf16.mxu0 0
        %708 = vmatpush2.bf16.xpose.msra.mxu0 0
        %709 = vmatprep.mubr.bf16.mxu0 0
        %710 = vmatmul.mubr.bf16.gmra.mxu0 %v675
        %v711 = vpop.f32.mrf.mxu0
        %v712 = vadd.f32 %v667, %v711
        %v713 = vpop.f32.mrf.mxu0
        %v714 = vpop.f32.mrf.mxu0
        %v715 = vadd.f32 %v668, %v714
        %v716 = vpop.f32.mrf.mxu0
        %717 = vmatprep.mubr.bf16.mxu0 0
        %718 = vmatmul.mubr.bf16.gmra.mxu0 %v676
        %v719 = vpop.f32.mrf.mxu0
        %v720 = vadd.f32 %v669, %v719
        %v721 = vpop.f32.mrf.mxu0
        %v722 = vpop.f32.mrf.mxu0
        %v723 = vadd.f32 %v670, %v722
        %v724 = vpop.f32.mrf.mxu0
        %725 = vdwg.mxu0
        %vm726 = vcmask 64512
        %v727 = vsel %vm726, %v712, -inf
        %728 = vmax.xlane.f32.xlu0 %v727
        %v729 = vpop.xlane.xlu0 %728
        %v730 = vsel %vm726, %v715, -inf
        %731 = vmax.xlane.f32.xlu0 %v730
        %v732 = vpop.xlane.xlu0 %731
        %v733 = vsel %vm726, %v720, -inf
        %734 = vmax.xlane.f32.xlu0 %v733
        %v735 = vpop.xlane.xlu0 %734
        %v736 = vsel %vm726, %v723, -inf
        %737 = vmax.xlane.f32.xlu0 %v736
        %v738 = vpop.xlane.xlu0 %737
        %v739 = vsub.f32 %v712, %v729
        %v740 = vsub.f32 %v715, %v732
        %v741 = vsub.f32 %v720, %v735
        %v742 = vsub.f32 %v723, %v738
        %v743 = vmul.f32 %v739, 1.442695
        %v744 = vpow.pop %v743
        %v745 = vmul.f32 %v740, 1.442695
        %v746 = vpow.pop %v745
        %v747 = vmul.f32 %v741, 1.442695
        %v748 = vpow.pop %v747
        %v749 = vmul.f32 %v742, 1.442695
        %v750 = vpow.pop %v749
        %v751 = vsel %vm726, %v744, 0.0
        %752 = vadd.xlane.f32.xlu0 %v751
        %v753 = vpop.xlane.xlu0 %752
        %v754 = vsel %vm726, %v746, 0.0
        %755 = vadd.xlane.f32.xlu0 %v754
        %v756 = vpop.xlane.xlu0 %755
        %v757 = vsel %vm726, %v748, 0.0
        %758 = vadd.xlane.f32.xlu0 %v757
        %v759 = vpop.xlane.xlu0 %758
        %v760 = vsel %vm726, %v750, 0.0
        %761 = vadd.xlane.f32.xlu0 %v760
        %v762 = vpop.xlane.xlu0 %761
        %v763 = vrcp.pop %v753
        %v764 = vrcp.pop %v756
        %v765 = vrcp.pop %v759
        %v766 = vrcp.pop %v762
        %v767 = vmul.f32 %v744, %v763
        %v768 = vmul.f32 %v746, %v764
        %v769 = vmul.f32 %v748, %v765
        %v770 = vmul.f32 %v750, %v766
        %v771 = vpack.c.bf16 %v767, %v767
        %v772 = vmul.f32 %v639, %v651
        %v773 = vpack.c.bf16 %v772, %v772
        %v774 = vpack.c.bf16 %v768, %v768
        %v775 = vmul.f32 %v639, %v656
        %v776 = vpack.c.bf16 %v775, %v775
        %v778 = vsel %vm726, %v774, 0
        %vm780 = vcmask 1043456
        %v782 = vsel %vm780, %v776, 0
        %784 = vmatprep.subr.bf16.mxu0 0
        %785 = vmatpush1.bf16.msra.mxu0 0
        %786 = vmatprep.subr.bf16.mxu0 0
        %787 = vmatpush1.bf16.msra.mxu0 0
        %788 = vmatprep.subr.bf16.mxu0 0
        %789 = vmatpush1.bf16.msra.mxu0 0
        %790 = vmatprep.subr.bf16.mxu0 0
        %791 = vmatpush1.bf16.msra.mxu0 0
        %792 = vmatprep.subr.bf16.mxu0 0
        %793 = vmatpush1.bf16.msra.mxu0 0
        %794 = vmatprep.subr.bf16.mxu0 0
        %795 = vmatpush1.bf16.msra.mxu0 0
        %796 = vmatprep.subr.bf16.mxu0 0
        %797 = vmatpush1.bf16.msra.mxu0 0
        %798 = vmatprep.subr.bf16.mxu0 0
        %799 = vmatpush1.bf16.msra.mxu0 %v782
        %800 = vmatprep.subr.bf16.mxu0 0
        %801 = vmatpush2.bf16.msra.mxu0 0
        %802 = vmatprep.subr.bf16.mxu0 0
        %803 = vmatpush2.bf16.msra.mxu0 0
        %804 = vmatprep.subr.bf16.mxu0 0
        %805 = vmatpush2.bf16.msra.mxu0 0
        %806 = vmatprep.subr.bf16.mxu0 0
        %807 = vmatpush2.bf16.msra.mxu0 0
        %808 = vmatprep.subr.bf16.mxu0 0
        %809 = vmatpush2.bf16.msra.mxu0 0
        %810 = vmatprep.subr.bf16.mxu0 0
        %811 = vmatpush2.bf16.msra.mxu0 0
        %812 = vmatprep.subr.bf16.mxu0 0
        %813 = vmatpush2.bf16.msra.mxu0 0
        %814 = vmatprep.subr.bf16.mxu0 0
        %815 = vmatpush2.bf16.msra.mxu0 0
        %816 = vmatprep.mubr.bf16.mxu0 0
        %817 = vmatmul.mubr.bf16.gmra.mxu0 %v778
        %v818 = vpop.f32.mrf.mxu0
        %v819 = vadd.f32 0.0, %v818
        %v820 = vpop.f32.mrf.mxu0
        %v821 = vpop.f32.mrf.mxu0
        %v822 = vpop.f32.mrf.mxu0
        %823 = vdwg.mxu0
        %v825 = vsel %vm726, %v771, 0
        %v828 = vsel %vm780, %v773, 0
        %830 = vmatprep.subr.bf16.mxu0 0
        %831 = vmatpush1.bf16.msra.mxu0 0
        %832 = vmatprep.subr.bf16.mxu0 0
        %833 = vmatpush1.bf16.msra.mxu0 0
        %834 = vmatprep.subr.bf16.mxu0 0
        %835 = vmatpush1.bf16.msra.mxu0 0
        %836 = vmatprep.subr.bf16.mxu0 0
        %837 = vmatpush1.bf16.msra.mxu0 0
        %838 = vmatprep.subr.bf16.mxu0 0
        %839 = vmatpush1.bf16.msra.mxu0 0
        %840 = vmatprep.subr.bf16.mxu0 0
        %841 = vmatpush1.bf16.msra.mxu0 0
        %842 = vmatprep.subr.bf16.mxu0 0
        %843 = vmatpush1.bf16.msra.mxu0 0
        %844 = vmatprep.subr.bf16.mxu0 0
        %845 = vmatpush1.bf16.msra.mxu0 %v828
        %846 = vmatprep.subr.bf16.mxu0 0
        %847 = vmatpush2.bf16.msra.mxu0 0
        %848 = vmatprep.subr.bf16.mxu0 0
        %849 = vmatpush2.bf16.msra.mxu0 0
        %850 = vmatprep.subr.bf16.mxu0 0
        %851 = vmatpush2.bf16.msra.mxu0 0
        %852 = vmatprep.subr.bf16.mxu0 0
        %853 = vmatpush2.bf16.msra.mxu0 0
        %854 = vmatprep.subr.bf16.mxu0 0
        %855 = vmatpush2.bf16.msra.mxu0 0
        %856 = vmatprep.subr.bf16.mxu0 0
        %857 = vmatpush2.bf16.msra.mxu0 0
        %858 = vmatprep.subr.bf16.mxu0 0
        %859 = vmatpush2.bf16.msra.mxu0 0
        %860 = vmatprep.subr.bf16.mxu0 0
        %861 = vmatpush2.bf16.msra.mxu0 0
        %862 = vmatprep.mubr.bf16.mxu0 0
        %863 = vmatmul.mubr.bf16.gmra.mxu0 %v825
        %v864 = vpop.f32.mrf.mxu0
        %v865 = vadd.f32 %v819, %v864
        %v866 = vpop.f32.mrf.mxu0
        %v867 = vpop.f32.mrf.mxu0
        %v868 = vpop.f32.mrf.mxu0
        %869 = vdwg.mxu0
        %v870 = vpack.c.bf16 %v769, %v769
        %v871 = vmul.f32 %v639, %v661
        %v872 = vpack.c.bf16 %v871, %v871
        %v874 = vsel %vm726, %v870, 0
        %v877 = vsel %vm780, %v872, 0
        %879 = vmatprep.subr.bf16.mxu0 0
        %880 = vmatpush1.bf16.msra.mxu0 0
        %881 = vmatprep.subr.bf16.mxu0 0
        %882 = vmatpush1.bf16.msra.mxu0 0
        %883 = vmatprep.subr.bf16.mxu0 0
        %884 = vmatpush1.bf16.msra.mxu0 0
        %885 = vmatprep.subr.bf16.mxu0 0
        %886 = vmatpush1.bf16.msra.mxu0 0
        %887 = vmatprep.subr.bf16.mxu0 0
        %888 = vmatpush1.bf16.msra.mxu0 0
        %889 = vmatprep.subr.bf16.mxu0 0
        %890 = vmatpush1.bf16.msra.mxu0 0
        %891 = vmatprep.subr.bf16.mxu0 0
        %892 = vmatpush1.bf16.msra.mxu0 0
        %893 = vmatprep.subr.bf16.mxu0 0
        %894 = vmatpush1.bf16.msra.mxu0 %v877
        %895 = vmatprep.subr.bf16.mxu0 0
        %896 = vmatpush2.bf16.msra.mxu0 0
        %897 = vmatprep.subr.bf16.mxu0 0
        %898 = vmatpush2.bf16.msra.mxu0 0
        %899 = vmatprep.subr.bf16.mxu0 0
        %900 = vmatpush2.bf16.msra.mxu0 0
        %901 = vmatprep.subr.bf16.mxu0 0
        %902 = vmatpush2.bf16.msra.mxu0 0
        %903 = vmatprep.subr.bf16.mxu0 0
        %904 = vmatpush2.bf16.msra.mxu0 0
        %905 = vmatprep.subr.bf16.mxu0 0
        %906 = vmatpush2.bf16.msra.mxu0 0
        %907 = vmatprep.subr.bf16.mxu0 0
        %908 = vmatpush2.bf16.msra.mxu0 0
        %909 = vmatprep.subr.bf16.mxu0 0
        %910 = vmatpush2.bf16.msra.mxu0 0
        %911 = vmatprep.mubr.bf16.mxu0 0
        %912 = vmatmul.mubr.bf16.gmra.mxu0 %v874
        %v913 = vpop.f32.mrf.mxu0
        %v914 = vadd.f32 0.0, %v913
        %v915 = vpop.f32.mrf.mxu0
        %v916 = vpop.f32.mrf.mxu0
        %v917 = vpop.f32.mrf.mxu0
        %918 = vdwg.mxu0
        %v919 = vadd.f32 %v865, %v914
        %v920 = vpack.c.bf16 %v770, %v770
        %v921 = vmul.f32 %v639, %v666
        %v922 = vpack.c.bf16 %v921, %v921
        %v924 = vsel %vm726, %v920, 0
        %v927 = vsel %vm780, %v922, 0
        %929 = vmatprep.subr.bf16.mxu0 0
        %930 = vmatpush1.bf16.msra.mxu0 0
        %931 = vmatprep.subr.bf16.mxu0 0
        %932 = vmatpush1.bf16.msra.mxu0 0
        %933 = vmatprep.subr.bf16.mxu0 0
        %934 = vmatpush1.bf16.msra.mxu0 0
        %935 = vmatprep.subr.bf16.mxu0 0
        %936 = vmatpush1.bf16.msra.mxu0 0
        %937 = vmatprep.subr.bf16.mxu0 0
        %938 = vmatpush1.bf16.msra.mxu0 0
        %939 = vmatprep.subr.bf16.mxu0 0
        %940 = vmatpush1.bf16.msra.mxu0 0
        %941 = vmatprep.subr.bf16.mxu0 0
        %942 = vmatpush1.bf16.msra.mxu0 0
        %943 = vmatprep.subr.bf16.mxu0 0
        %944 = vmatpush1.bf16.msra.mxu0 %v927
        %945 = vmatprep.subr.bf16.mxu0 0
        %946 = vmatpush2.bf16.msra.mxu0 0
        %947 = vmatprep.subr.bf16.mxu0 0
        %948 = vmatpush2.bf16.msra.mxu0 0
        %949 = vmatprep.subr.bf16.mxu0 0
        %950 = vmatpush2.bf16.msra.mxu0 0
        %951 = vmatprep.subr.bf16.mxu0 0
        %952 = vmatpush2.bf16.msra.mxu0 0
        %953 = vmatprep.subr.bf16.mxu0 0
        %954 = vmatpush2.bf16.msra.mxu0 0
        %955 = vmatprep.subr.bf16.mxu0 0
        %956 = vmatpush2.bf16.msra.mxu0 0
        %957 = vmatprep.subr.bf16.mxu0 0
        %958 = vmatpush2.bf16.msra.mxu0 0
        %959 = vmatprep.subr.bf16.mxu0 0
        %960 = vmatpush2.bf16.msra.mxu0 0
        %961 = vmatprep.mubr.bf16.mxu0 0
        %962 = vmatmul.mubr.bf16.gmra.mxu0 %v924
        %v963 = vpop.f32.mrf.mxu0
        %v964 = vadd.f32 0.0, %v963
        %v965 = vpop.f32.mrf.mxu0
        %v966 = vpop.f32.mrf.mxu0
        %v967 = vpop.f32.mrf.mxu0
        %968 = vdwg.mxu0
        %v969 = vadd.f32 %v919, %v964
        %v970 = vpack.c.bf16 %v969, %v969
        %v971 = vld [vmem:[#allocation5] sm:$0xf]
        %v972 = vld [vmem:[#allocation5 + $0x4] sm:$0xf]
        %v973 = vld [vmem:[#allocation5 + $0x8] sm:$0xf]
        %v974 = vld [vmem:[#allocation5 + $0xc] sm:$0xf]
        %v975 = vld [vmem:[#allocation5 + $0x10] sm:$0xf]
        %v976 = vld [vmem:[#allocation5 + $0x14] sm:$0xf]
        %v977 = vld [vmem:[#allocation5 + $0x18] sm:$0xf]
        %v978 = vld [vmem:[#allocation5 + $0x1c] sm:$0xf]
        %v979 = vld [vmem:[#allocation5 + $0x20] sm:$0xf]
        %v980 = vld [vmem:[#allocation5 + $0x24] sm:$0xf]
        %v981 = vld [vmem:[#allocation5 + $0x28] sm:$0xf]
        %v982 = vld [vmem:[#allocation5 + $0x2c] sm:$0xf]
        %v983 = vld [vmem:[#allocation5 + $0x30] sm:$0xf]
        %v984 = vld [vmem:[#allocation5 + $0x34] sm:$0xf]
        %v985 = vld [vmem:[#allocation5 + $0x38] sm:$0xf]
        %v986 = vld [vmem:[#allocation5 + $0x3c] sm:$0xf]
        %v987 = vld [vmem:[%s7] sm:$0x1]
        %v989 = vlaneseq
        %v990 = vshrl.u32 %v989, 7
        %v991 = vsub.s32 0, %v990
        %v992 = vrot.slane %v987, %v991
        %v1010 = vunpack.c.l.b16 %v971
        %v1011 = vunpack.c.l.b16 %v972
        %v1012 = vunpack.c.l.b16 %v973
        %v1013 = vunpack.c.l.b16 %v974
        %v1014 = vunpack.c.l.b16 %v975
        %v1015 = vunpack.c.l.b16 %v976
        %v1016 = vunpack.c.l.b16 %v977
        %v1017 = vunpack.c.l.b16 %v978
        %v1018 = vunpack.c.l.b16 %v979
        %v1019 = vunpack.c.l.b16 %v980
        %v1020 = vunpack.c.l.b16 %v981
        %v1021 = vunpack.c.l.b16 %v982
        %v1022 = vunpack.c.l.b16 %v983
        %v1023 = vunpack.c.l.b16 %v984
        %v1024 = vunpack.c.l.b16 %v985
        %v1025 = vunpack.c.l.b16 %v986
        %v1026 = vpack.c.b16 %v1011, %v1010
        %v1027 = vpack.c.b16 %v1013, %v1012
        %v1028 = vpack.c.b16 %v1015, %v1014
        %v1029 = vpack.c.b16 %v1017, %v1016
        %v1030 = vpack.c.b16 %v1019, %v1018
        %v1031 = vpack.c.b16 %v1021, %v1020
        %v1032 = vpack.c.b16 %v1023, %v1022
        %v1033 = vpack.c.b16 %v1025, %v1024
        %1042 = vmatprep.subr.bf16.mxu0 0
        %1043 = vmatpush1.bf16.msra.mxu0 %v1033
        %1044 = vmatprep.subr.bf16.mxu0 0
        %1045 = vmatpush1.bf16.msra.mxu0 %v1032
        %1046 = vmatprep.subr.bf16.mxu0 0
        %1047 = vmatpush1.bf16.msra.mxu0 %v1031
        %1048 = vmatprep.subr.bf16.mxu0 0
        %1049 = vmatpush1.bf16.msra.mxu0 %v1030
        %1050 = vmatprep.subr.bf16.mxu0 0
        %1051 = vmatpush1.bf16.msra.mxu0 %v1029
        %1052 = vmatprep.subr.bf16.mxu0 0
        %1053 = vmatpush1.bf16.msra.mxu0 %v1028
        %1054 = vmatprep.subr.bf16.mxu0 0
        %1055 = vmatpush1.bf16.msra.mxu0 %v1027
        %1056 = vmatprep.subr.bf16.mxu0 0
        %1057 = vmatpush1.bf16.msra.mxu0 %v1026
        %1058 = vmatprep.subr.bf16.mxu0 0
        %1059 = vmatpush2.bf16.msra.mxu0 0
        %1060 = vmatprep.subr.bf16.mxu0 0
        %1061 = vmatpush2.bf16.msra.mxu0 0
        %1062 = vmatprep.subr.bf16.mxu0 0
        %1063 = vmatpush2.bf16.msra.mxu0 0
        %1064 = vmatprep.subr.bf16.mxu0 0
        %1065 = vmatpush2.bf16.msra.mxu0 0
        %1066 = vmatprep.subr.bf16.mxu0 0
        %1067 = vmatpush2.bf16.msra.mxu0 0
        %1068 = vmatprep.subr.bf16.mxu0 0
        %1069 = vmatpush2.bf16.msra.mxu0 0
        %1070 = vmatprep.subr.bf16.mxu0 0
        %1071 = vmatpush2.bf16.msra.mxu0 0
        %1072 = vmatprep.subr.bf16.mxu0 0
        %1073 = vmatpush2.bf16.msra.mxu0 0
        %1074 = vmatprep.mubr.bf16.mxu0 0
        %1075 = vmatmul.mubr.bf16.gmra.mxu0 %v970
        %v1076 = vpop.f32.mrf.mxu0
        %v1077 = vadd.f32 %v992, %v1076
        %v1078 = vpop.f32.mrf.mxu0
        %v1079 = vpop.f32.mrf.mxu0
        %v1080 = vpop.f32.mrf.mxu0
        %1081 = vdwg.mxu0
        %1082 = vst [vmem:[%s352] sm:$0xff] %v1077
        %s1083 = sand.u32 %s215, 1
        %s1084 = scalar_lea.sflag [#allocation4], %s1083
        %s1085 = sand.u32 %s215, 1
        %s1086 = smul.addr %s1085, 8
        %s1087 = scalar_lea.vmem [#allocation7], %s1086
        // Predicated region
        $region61: #{tpu_custom_call.1} parent=51 // pred_check
          %p1088 = pneg %p225
        $region62: #{tpu_custom_call.1} parent=51 // pred_check_branch
          %1090 = sbr.rel (%p1088) target = $region64
        $region63: #{tpu_custom_call.1} parent=51 // pred_region
          %s1092 = ssub.s32 128, 128
          %1093 = vsyncadd %s1084, %s1092
          %s1094 = smul.addr %s24, 128
          %s1095 = scalar_lea.hbm %s8, %s1094
          %s1097 = sshll.u32 %s1087, 4
          %s1098 = int_to_ptr.vmem [resolvable:$true] %s1097
          %1100 = dma.vmem_to_hbm [thread:$0]  %s1098, 128, %s1095, %s1084
        $region64: #{tpu_custom_call.1} parent=51 // pred_fallthru
          _
      $region52: #{tpu_custom_call.1} parent=5 // pred_fallthru
        _
      %p1101 = scmp.le.s32.totalorder 2, %s19
      // Predicated region
      $region65: #{tpu_custom_call.1} parent=5 // pred_check
        %p1102 = pneg %p1101
      $region66: #{tpu_custom_call.1} parent=5 // pred_check_branch
        %1104 = sbr.rel (%p1102) target = $region68
      $region67: #{tpu_custom_call.1} parent=5 // pred_region
        %s1105 = ssub.s32 %s19, 2
        // Predicated region
        $region69: #{tpu_custom_call.1} parent=67 // pred_check
          %p1106 = pneg %p231
        $region70: #{tpu_custom_call.1} parent=67 // pred_check_branch
          %1108 = sbr.rel (%p1106) target = $region72
        $region71: #{tpu_custom_call.1} parent=67 // pred_region
          %s1109 = sand.u32 %s216, 1
          %s1110 = scalar_lea.sflag [#allocation4], %s1109
          %s1111 = sand.u32 %s216, 1
          %s1112 = smul.addr %s1111, 8
          %s1113 = scalar_lea.vmem [#allocation7], %s1112
          %1114 = dma.done %s1110, 128
        $region72: #{tpu_custom_call.1} parent=67 // pred_fallthru
          _
      $region68: #{tpu_custom_call.1} parent=5 // pred_fallthru
        _
    $region6: #{tpu_custom_call.1} parent=1 // loop_footer
      %s23 = sadd.s32 1, %s19
    $region7: #{tpu_custom_call.1} parent=1 // loop_footer_branch
      %18 = sbr.rel target = $region3
    $region8: #{tpu_custom_call.1} parent=1 // loop_exit
      _
    %1115 = vsyncpa [#allocation3], 1
    %s1116 = scalar_lea.sflag [#allocation3], 1
    %1117 = vsyncpa %s1116, 1
    %1118 = vsyncpa [#allocation6], 1
    %1119 = vsyncpa [#allocation4], 1
    %s1120 = scalar_lea.sflag [#allocation4], 1
    %1121 = vsyncpa %s1120, 1

</llo_original>
